<compile_context>
chip_gen: v7x
topology: tpu7x:2x2x1
jax: 0.10.0
libtpu: 0.0.40
codegen_flags: <defaults>
</compile_context>

<pallas_src>
import functools

import jax
import jax.numpy as jnp
from jax.experimental import pallas as pl
from jax.experimental.pallas import tpu as pltpu


def _round_up(x, m):
    return (x + m - 1) // m * m


def _tpu_generation() -> int:
    """Best-effort TPU generation from device_kind ('TPU v5 lite' -> 5, 'TPU v7x' -> 7)."""
    try:
        kind = jax.devices()[0].device_kind
    except Exception:  # pragma: no cover - defensive
        return 0
    for ch in kind:
        if ch.isdigit():
            return int(ch)
    return 0


def _nll_partial_kernel(pred_ref, tgt_ref, out_ref, *, n_total, tile_n):
    """Partial sum of pred[r, target[r]] over this tile's valid rows.

    pred_ref: (tile_n, C) log-probs in native dtype (upcast in-register).
    tgt_ref : (tile_n, 1) int32 labels.
    out_ref : (1, 128) lane-dense block; the scalar partial is broadcast into it
              (unmasked vst); the wrapper reads element [i, 0] per tile.
    """
    i = pl.program_id(0)
    p = pred_ref[...].astype(jnp.float32)                       # (tile_n, C)
    t = tgt_ref[...]                                            # (tile_n, 1) int32
    col = jax.lax.broadcasted_iota(jnp.int32, p.shape, 1)
    row = jax.lax.broadcasted_iota(jnp.int32, p.shape, 0) + i * tile_n
    # One-hot gather + ragged-row mask.  Keep jnp.where (select), not p * mask, so
    # garbage/NaN in out-of-range rows of the last ragged block cannot propagate.
    sel = (col == t) & (row < n_total)
    partial = jnp.sum(jnp.where(sel, p, jnp.zeros_like(p)))
    out_ref[...] = jnp.full(out_ref.shape, partial, dtype=jnp.float32)


def nll_loss_pallas(pred, target, *, max_tile_rows=None):
    """pred: (N, C) log-probs (f32/bf16), target: (N,) int. Returns scalar mean NLL."""
    n, c = pred.shape
    itemsize = jnp.dtype(pred.dtype).itemsize

    # ---- Generation-aware VMEM budget (padded-footprint math) -------------------
    gen = _tpu_generation()
    if gen >= 7:
        # v7x: 64 MiB physical / 32 MiB scoped default -> keep the double-buffered
        # block set around ~20 MiB and cap the explicit limit well under physical.
        block_budget, vmem_cap = 20 << 20, 48 << 20
    else:
        # v4/v5e/v6e: 128 MiB physical VMEM -> spend it on big blocks.
        block_budget, vmem_cap = 48 << 20, 96 << 20

    lane = 128
    pred_row_bytes = _round_up(c, lane) * itemsize      # pred block row, lane-padded
    tgt_row_bytes = lane * 4                            # (tile_n, 1) int32 pads to 128 lanes
    row_bytes_buffered = 2 * (pred_row_bytes + tgt_row_bytes)   # default Buffered(2)

    # Rows per tile: as many as the budget allows, rounded to a 32-sublane quantum
    # (covers f32 / bf16 / int8 packing).  Bigger blocks, not deeper pipelines.
    tile_n = int(block_budget // row_bytes_buffered)
    tile_n = max(32, (tile_n // 32) * 32)
    if max_tile_rows is not None:                       # test hook / manual override
        tile_n = min(tile_n, max(8, (int(max_tile_rows) // 8) * 8))
    if tile_n >= n:
        tile_n = n                                      # whole input, single full-extent block
    num_tiles = pl.cdiv(n, tile_n)

    out_bytes = 2 * 8 * lane * 4                        # double-buffered (1,128) out block (padded)
    footprint = row_bytes_buffered * _round_up(tile_n, 32) + out_bytes
    vmem_limit = int(min(vmem_cap, max(32 << 20, footprint + (8 << 20))))

    # ---- Grid semantics ----------------------------------------------------------
    if num_tiles == 1:
        dims = ("arbitrary",)
    elif gen >= 7:
        # Actually split independent tiles across v7x's two TensorCores.
        dims = (pltpu.CORE_PARALLEL,)
    else:
        dims = ("parallel",)

    tgt2d = target.astype(jnp.int32).reshape(n, 1)
    kernel = functools.partial(_nll_partial_kernel, n_total=n, tile_n=tile_n)

    partials = pl.pallas_call(
        kernel,
        out_shape=jax.ShapeDtypeStruct((num_tiles, lane), jnp.float32),
        grid_spec=pltpu.PrefetchScalarGridSpec(
            num_scalar_prefetch=0,
            grid=(num_tiles,),
            in_specs=[
                pl.BlockSpec((tile_n, c), lambda i: (i, 0)),
                pl.BlockSpec((tile_n, 1), lambda i: (i, 0)),
            ],
            out_specs=pl.BlockSpec((1, lane), lambda i: (i, 0)),
        ),
        compiler_params=pltpu.CompilerParams(
            dimension_semantics=dims,
            vmem_limit_bytes=vmem_limit,
        ),
    )(pred, tgt2d)

    # Tiny cross-tile finish (num_tiles scalars) in plain JAX.
    return -jnp.sum(partials[:, 0]) / jnp.float32(n)


def get_loss_forward(pred, target, trans_feat):
    # The PyTorch module ignores trans_feat: forward = F.nll_loss(pred, target).
    del trans_feat
    return nll_loss_pallas(pred, target)


if __name__ == "__main__":
    key = jax.random.PRNGKey(0)
    k1, k2, k3, k4, k5, k6, k7 = jax.random.split(key, 7)

    # Case 1: small part-seg-like shapes, single-block fast path.
    N, C = 16, 4
    pred = jax.nn.log_softmax(jax.random.normal(k1, (N, C), dtype=jnp.float32), axis=-1)
    target = jax.random.randint(k2, (N,), 0, C, dtype=jnp.int32)
    trans_feat = jax.random.normal(k3, (2, 8, 8), dtype=jnp.float32)  # unused by the module

    loss = jax.block_until_ready(get_loss_forward(pred, target, trans_feat))
    ref = -jnp.mean(pred[jnp.arange(N), target])
    assert jnp.allclose(loss, ref, atol=1e-5, rtol=1e-5), (loss, ref)

    # Case 2: multi-tile + ragged-N path (force small tiles to exercise the mask).
    N2, C2 = 100, 7
    pred2 = jax.nn.log_softmax(jax.random.normal(k4, (N2, C2), dtype=jnp.float32), axis=-1)
    target2 = jax.random.randint(k5, (N2,), 0, C2, dtype=jnp.int32)
    loss2 = jax.block_until_ready(nll_loss_pallas(pred2, target2, max_tile_rows=32))
    ref2 = -jnp.mean(pred2[jnp.arange(N2), target2])
    assert jnp.allclose(loss2, ref2, atol=1e-5, rtol=1e-5), (loss2, ref2)

    # Case 3: native bf16 pred (no wrapper upcast), single block.
    N3, C3 = 32, 8
    pred3 = jax.nn.log_softmax(
        jax.random.normal(k6, (N3, C3), dtype=jnp.float32), axis=-1
    ).astype(jnp.bfloat16)
    target3 = jax.random.randint(k7, (N3,), 0, C3, dtype=jnp.int32)
    loss3 = jax.block_until_ready(nll_loss_pallas(pred3, target3))
    ref3 = -jnp.mean(pred3[jnp.arange(N3), target3].astype(jnp.float32))
    assert jnp.allclose(loss3, ref3, atol=1e-3, rtol=1e-3), (loss3, ref3)

    print("KERNEL_OK")
</pallas_src>

<mosaic_0001>
module attributes {stable_mosaic.version = 11 : i64} {
  func.func @_nll_partial_kernel(%arg0: i32, %arg1: memref<16x4xf32, #tpu.memory_space<vmem>>, %arg2: memref<16x1xi32, #tpu.memory_space<vmem>>, %arg3: memref<1x128xf32, #tpu.memory_space<vmem>>) attributes {dimension_semantics = [#tpu.dimension_semantics<arbitrary>], iteration_bounds = array<i64: 1>, scalar_prefetch = 0 : i64, scratch_operands = 0 : i64, tpu.core_type = #tpu.core_type<tc>, window_params = [{transform_indices = @transform_0, window_bounds = array<i64: 16, 4>}, {transform_indices = @transform_1, window_bounds = array<i64: 16, 1>}, {transform_indices = @transform_2, window_bounds = array<i64: 1, 128>}]} {
    %c0 = arith.constant 0 : index
    %c0_0 = arith.constant 0 : index
    %0 = vector.load %arg1[%c0, %c0_0] : memref<16x4xf32, #tpu.memory_space<vmem>>, vector<16x4xf32>
    %c0_1 = arith.constant 0 : index
    %c0_2 = arith.constant 0 : index
    %1 = vector.load %arg2[%c0_1, %c0_2] : memref<16x1xi32, #tpu.memory_space<vmem>>, vector<16x1xi32>
    %2 = tpu.iota {dimensions = array<i32: 1>} : vector<16x4xi32>
    %3 = tpu.iota {dimensions = array<i32: 0>} : vector<16x4xi32>
    %c16_i32 = arith.constant 16 : i32
    %4 = arith.muli %arg0, %c16_i32 : i32
    %5 = vector.broadcast %4 : i32 to vector<16x4xi32>
    %6 = arith.addi %3, %5 : vector<16x4xi32>
    %7 = vector.broadcast %1 : vector<16x1xi32> to vector<16x4xi32>
    %8 = arith.cmpi eq, %2, %7 : vector<16x4xi32>
    %c16_i32_3 = arith.constant 16 : i32
    %9 = vector.broadcast %c16_i32_3 : i32 to vector<16x4xi32>
    %10 = arith.cmpi slt, %6, %9 : vector<16x4xi32>
    %11 = arith.andi %8, %10 : vector<16x4xi1>
    %cst = arith.constant 0.000000e+00 : f32
    %12 = vector.broadcast %cst : f32 to vector<16x4xf32>
    %13 = arith.select %11, %0, %12 : vector<16x4xi1>, vector<16x4xf32>
    %14 = vector.shape_cast %13 : vector<16x4xf32> to vector<1x16x4xf32>
    %cst_4 = arith.constant dense<0.000000e+00> : vector<1xf32>
    %15 = vector.multi_reduction <add>, %14, %cst_4 [1, 2] : vector<1x16x4xf32> to vector<1xf32>
    %16 = vector.shape_cast %15 : vector<1xf32> to vector<1x1x1xf32>
    %17 = vector.extract %16[0, 0, 0] : f32 from vector<1x1x1xf32>
    %18 = vector.broadcast %17 : f32 to vector<1x128xf32>
    %c0_5 = arith.constant 0 : index
    %c0_6 = arith.constant 0 : index
    %19 = vector.load %arg3[%c0_5, %c0_6] : memref<1x128xf32, #tpu.memory_space<vmem>>, vector<1x128xf32>
    tpu.vector_store %arg3[%c0_5, %c0_6], %18 {strides = array<i32>} : memref<1x128xf32, #tpu.memory_space<vmem>>, vector<1x128xf32>,
    return
  }
  func.func @transform_0(%arg0: i32) -> (i32, i32) {
    %c0_i32 = arith.constant 0 : i32
    %c0_i32_0 = arith.constant 0 : i32
    return %arg0, %c0_i32 : i32, i32
  }
  func.func @transform_1(%arg0: i32) -> (i32, i32) {
    %c0_i32 = arith.constant 0 : i32
    %c0_i32_0 = arith.constant 0 : i32
    return %arg0, %c0_i32 : i32, i32
  }
  func.func @transform_2(%arg0: i32) -> (i32, i32) {
    %c0_i32 = arith.constant 0 : i32
    %c0_i32_0 = arith.constant 0 : i32
    return %arg0, %c0_i32 : i32, i32
  }
}

</mosaic_0001>

<llo_original>
// kernel: tpu_custom_call.1
$region0: #{tpu_custom_call.1}
  #allocation0 [shape = 'u32[]', space=smem, size = 0x4, offset = 0x4, fixed_abs, tag = 'smem constant byte address 0x4 - core index']
  #allocation1 [shape = 'u32[144,128]{1,0:T(1,128)}', space=vmem, size = 0x12000, scoped, tag = 'internal scratch']
  %s0 = inlined_call_operand.vmem [shape: f32[16,4], index: 0, kind: input, shape index: {}]
  %s1 = inlined_call_operand.vmem [shape: s32[16,1], index: 1, kind: input, shape index: {}]
  %s2 = inlined_call_operand.hbm [shape: f32[1,128], index: 2, kind: output, shape index: {}]
  %s3 = sld [smem:[#allocation0]]
  $region18: #{tpu_custom_call.1} parent=0
    _
  %s5 = ssub.s32 1, %s3
  %s6 = scalar_select 0, %s5, %s3
  $region1: #{tpu_custom_call.1} parent=0
    #allocation2 [shape = 'u8[512]{0}', space=vmem, size = 0x400, scoped, tag = 'output window, operand 0, single buffered']
    #allocation3 [shape = 's32[1]{0}', space=sflag, size = 0x4, scoped, tag = 'scoped memory for tpu_custom_call.1']
    %7 = vsyncpa [#allocation3], 0
    // Predicated region
    $region2: #{tpu_custom_call.1} parent=1 // pred_check
      _
    $region3: #{tpu_custom_call.1} parent=1 // pred_check_branch
      %9 = sbr.rel (0) target = $region5
    $region4: #{tpu_custom_call.1} parent=1 // pred_region
      _
    $region5: #{tpu_custom_call.1} parent=1 // pred_fallthru
      _
    // Predicated region
    $region6: #{tpu_custom_call.1} parent=1 // pred_check
      _
    $region7: #{tpu_custom_call.1} parent=1 // pred_check_branch
      %11 = sbr.rel (0) target = $region9
    $region8: #{tpu_custom_call.1} parent=1 // pred_region
      _
    $region9: #{tpu_custom_call.1} parent=1 // pred_fallthru
      _
    %v12 = vld [vmem:[%s0] sm:$0xff]
    %v13 = vld [vmem:[%s0 + $0x8] sm:$0xff]
    %v14 = vld [vmem:[%s1] sm:$0xff]
    %v15 = vld [vmem:[%s1 + $0x8] sm:$0xff]
    %v16 = vlaneseq
    %v17 = vand.u32 %v16, 127
    %v18 = vlaneseq
    %v19 = vshrl.u32 %v18, 7
    %v20 = vadd.s32 %v19, 8
    %s21 = smul.u32 0, 16
    %v22 = vstv %s21
    %v23 = vadd.s32 %v19, %v22
    %v24 = vadd.s32 %v20, %v22
    %25 = vset.pattern.permute.xlu0 0
    %26 = vperm.xlu0 %25, %v14
    %v27 = vpop.permute.xlu0 %26
    %28 = vset.pattern.permute.xlu0 0
    %29 = vperm.xlu0 %28, %v15
    %v30 = vpop.permute.xlu0 %29
    %vm31 = vcmp.eq.s32.totalorder %v17, %v27
    %vm32 = vcmp.eq.s32.totalorder %v17, %v30
    %vm33 = vcmp.lt.s32.totalorder %v23, 16
    %vm34 = vcmp.lt.s32.totalorder %v24, 16
    %vm35 = vmand %vm31, %vm33
    %vm36 = vmand %vm32, %vm34
    %v37 = vsel %vm35, %v12, 0.0
    %v38 = vsel %vm36, %v13, 0.0
    %vm39 = vcmask 31744
    %v40 = vsel %vm39, %v37, 0.0
    %v41 = vsel %vm39, %v38, 0.0
    %v42 = vadd.f32 %v40, %v41
    %43 = vadd.xlane.f32.xlu0 %v42
    %v44 = vpop.xlane.xlu0 %43
    %v45 = vrot.slane %v44, 4
    %v46 = vadd.f32 %v44, %v45
    %v47 = vrot.slane %v46, 2
    %v48 = vadd.f32 %v46, %v47
    %v49 = vrot.slane %v48, 1
    %v50 = vadd.f32 %v48, %v49
    %s51 = vtos %v50
    %v52 = vstv %s51
    %53 = vst [vmem:[#allocation2] sm:$0x1] %v52
    // Predicated region
    $region10: #{tpu_custom_call.1} parent=1 // pred_check
      _
    $region11: #{tpu_custom_call.1} parent=1 // pred_check_branch
      %55 = sbr.rel (0) target = $region13
    $region12: #{tpu_custom_call.1} parent=1 // pred_region
      %s57 = ssub.s32 16, 16
      %58 = vsyncadd [#allocation3], %s57
      %s60 = sshll.u32 [#allocation2], 4
      %s61 = int_to_ptr.vmem [resolvable:$true] %s60
      %63 = dma.vmem_to_hbm [thread:$0]  %s61, 16, %s2, [#allocation3]
    $region13: #{tpu_custom_call.1} parent=1 // pred_fallthru
      _
    // Predicated region
    $region14: #{tpu_custom_call.1} parent=1 // pred_check
      _
    $region15: #{tpu_custom_call.1} parent=1 // pred_check_branch
      %65 = sbr.rel (0) target = $region17
    $region16: #{tpu_custom_call.1} parent=1 // pred_region
      %66 = dma.done [#allocation3], 16
    $region17: #{tpu_custom_call.1} parent=1 // pred_fallthru
      _
    %67 = vsyncpa [#allocation3], 1

</llo_original>
